<compile_context>
chip_gen: v6e
topology: v6e:2x2x1
jax: 0.10.0
libtpu: 0.0.40
codegen_flags: <defaults>
</compile_context>

<pallas_src>
import functools

import jax
import jax.numpy as jnp
from jax.experimental import pallas as pl
from jax.experimental.pallas import tpu as pltpu


# ----------------------- in-kernel 2-D morphology helpers ---------------------
def _shift_prev_next(x, axis, fill_val, first_mask, last_mask):
    """Return (prev, next) neighbours of x along `axis` (2-D plane).

    Out-of-bounds neighbours are replaced by `fill_val` (+inf for min pooling,
    -inf for max pooling), reproducing PyTorch's -inf-padded max_pool2d.
    """
    h, w = x.shape
    aligned = (h % 8 == 0) and (w % 128 == 0)
    if aligned:
        # pltpu.roll == jnp.roll semantics: roll(x, +1)[i] = x[i-1].
        prv = jnp.where(first_mask, fill_val, pltpu.roll(x, 1, axis))
        nxt = jnp.where(last_mask, fill_val, pltpu.roll(x, -1, axis))
    else:
        # Fallback for planes that are not (8,128)-aligned (Mosaic rotate
        # requires aligned shapes): slice + concat with a fill border.
        fill_shape = list(x.shape)
        fill_shape[axis] = 1
        fill = jnp.full(fill_shape, fill_val, x.dtype)
        sl = [slice(None)] * x.ndim
        hi = list(sl); hi[axis] = slice(1, None)
        lo = list(sl); lo[axis] = slice(0, -1)
        nxt = jnp.concatenate([x[tuple(hi)], fill], axis=axis)
        prv = jnp.concatenate([fill, x[tuple(lo)]], axis=axis)
    return prv, nxt


def _min_pool3(x, axis, first_mask, last_mask):
    prv, nxt = _shift_prev_next(x, axis, jnp.inf, first_mask, last_mask)
    return jnp.minimum(jnp.minimum(prv, x), nxt)


def _max_pool3(x, axis, first_mask, last_mask):
    prv, nxt = _shift_prev_next(x, axis, -jnp.inf, first_mask, last_mask)
    return jnp.maximum(jnp.maximum(prv, x), nxt)


def _soft_erode(img, masks):
    first_row, last_row, first_col, last_col = masks
    p1 = _min_pool3(img, 0, first_row, last_row)   # (3,1) window along H
    p2 = _min_pool3(img, 1, first_col, last_col)   # (1,3) window along W
    return jnp.minimum(p1, p2)


def _soft_dilate(img, masks):
    first_row, last_row, first_col, last_col = masks
    return _max_pool3(_max_pool3(img, 0, first_row, last_row),
                      1, first_col, last_col)


def _soft_skel(img, iter_, masks):
    """soft_skel with the duplicated erode removed (erode(img) reused as next img)."""
    e = _soft_erode(img, masks)
    skel = jax.nn.relu(img - _soft_dilate(e, masks))       # img - open(img)
    for _ in range(iter_):                                  # static unroll
        img = e                                             # erode(prev img), reused
        e = _soft_erode(img, masks)
        delta = jax.nn.relu(img - _soft_dilate(e, masks))   # img - open(img)
        skel = skel + jax.nn.relu(delta - skel * delta)
    return skel


# ----------------------------------- kernel -----------------------------------
def _soft_cldice_partial_kernel(y_true_ref, y_pred_ref, out_ref, *, iter_):
    h, w = y_true_ref.shape[-2], y_true_ref.shape[-1]
    yt = y_true_ref[...].reshape(h, w).astype(jnp.float32)
    yp = y_pred_ref[...].reshape(h, w).astype(jnp.float32)

    # Border masks built once and reused across all skeleton iterations.
    row = jax.lax.broadcasted_iota(jnp.int32, (h, w), 0)
    col = jax.lax.broadcasted_iota(jnp.int32, (h, w), 1)
    masks = (row == 0, row == h - 1, col == 0, col == w - 1)

    # skeleton of the prediction -> accumulate its two sums, then release it.
    skel_pred = _soft_skel(yp, iter_, masks)
    s_pred_true = jnp.sum(skel_pred * yt)    # tprec numerator contribution
    s_pred = jnp.sum(skel_pred)              # tprec denominator contribution

    # skeleton of the ground truth -> its two sums.
    skel_true = _soft_skel(yt, iter_, masks)
    s_true_pred = jnp.sum(skel_true * yp)    # tsens numerator contribution
    s_true = jnp.sum(skel_true)              # tsens denominator contribution

    # Pack the 4 partial sums into a lane-aligned 128-wide vector.
    lane = jax.lax.broadcasted_iota(jnp.int32, (1, 128), 1)
    vec = (jnp.where(lane == 0, s_pred_true, 0.0)
           + jnp.where(lane == 1, s_pred, 0.0)
           + jnp.where(lane == 2, s_true_pred, 0.0)
           + jnp.where(lane == 3, s_true, 0.0)).astype(jnp.float32)
    out_ref[...] = vec.reshape(1, 1, 1, 128)


def soft_cldice(y_true, y_pred, iter_=3, smooth=1.0):
    assert y_true.shape == y_pred.shape and y_true.ndim == 4
    B, C, H, W = y_true.shape
    assert C >= 2, "soft_cldice drops channel 0 (background); need C >= 2"
    Cm = C - 1
    kernel = functools.partial(_soft_cldice_partial_kernel, iter_=iter_)

    partial = pl.pallas_call(
        kernel,
        out_shape=jax.ShapeDtypeStruct((B, Cm, 1, 128), jnp.float32),
        grid=(B, Cm),
        in_specs=[
            # background channel 0 is never loaded: channel block index c + 1
            pl.BlockSpec((1, 1, H, W), lambda b, c: (b, c + 1, 0, 0)),
            pl.BlockSpec((1, 1, H, W), lambda b, c: (b, c + 1, 0, 0)),
        ],
        out_specs=pl.BlockSpec((1, 1, 1, 128), lambda b, c: (b, c, 0, 0)),
        compiler_params=pltpu.CompilerParams(
            dimension_semantics=("parallel", "parallel"),
            vmem_limit_bytes=32 * 1024 * 1024,
        ),
    )(y_true, y_pred)

    # Finalize in the wrapper: tiny reduction + scalar arithmetic.
    sums = jnp.sum(partial, axis=(0, 1, 2))          # (128,), lanes 0..3 used
    smooth = jnp.float32(smooth)
    tprec = (sums[0] + smooth) / (sums[1] + smooth)
    tsens = (sums[2] + smooth) / (sums[3] + smooth)
    return 1.0 - 2.0 * (tprec * tsens) / (tprec + tsens)


# ---------------------------- pure-JAX reference -------------------------------
def _ref_shift_pair(x, axis, fill_val):
    shape = list(x.shape)
    shape[axis] = 1
    fill = jnp.full(shape, fill_val, x.dtype)
    sl = [slice(None)] * x.ndim
    hi = list(sl); hi[axis] = slice(1, None)
    lo = list(sl); lo[axis] = slice(0, -1)
    nxt = jnp.concatenate([x[tuple(hi)], fill], axis=axis)
    prv = jnp.concatenate([fill, x[tuple(lo)]], axis=axis)
    return prv, nxt


def _ref_min_pool3(x, axis):
    prv, nxt = _ref_shift_pair(x, axis, jnp.inf)
    return jnp.minimum(jnp.minimum(prv, x), nxt)


def _ref_max_pool3(x, axis):
    prv, nxt = _ref_shift_pair(x, axis, -jnp.inf)
    return jnp.maximum(jnp.maximum(prv, x), nxt)


def _ref_soft_erode(img):
    return jnp.minimum(_ref_min_pool3(img, 2), _ref_min_pool3(img, 3))


def _ref_soft_dilate(img):
    return _ref_max_pool3(_ref_max_pool3(img, 2), 3)


def _ref_soft_open(img):
    return _ref_soft_dilate(_ref_soft_erode(img))


def _ref_soft_skel(img, iter_):
    img1 = _ref_soft_open(img)
    skel = jax.nn.relu(img - img1)
    for _ in range(iter_):
        img = _ref_soft_erode(img)
        img1 = _ref_soft_open(img)
        delta = jax.nn.relu(img - img1)
        skel = skel + jax.nn.relu(delta - skel * delta)
    return skel


def _soft_cldice_ref(y_true, y_pred, iter_=3, smooth=1.0):
    y_true = y_true.astype(jnp.float32)
    y_pred = y_pred.astype(jnp.float32)
    skel_pred = _ref_soft_skel(y_pred, iter_)
    skel_true = _ref_soft_skel(y_true, iter_)
    tprec = (jnp.sum((skel_pred * y_true)[:, 1:]) + smooth) / (
        jnp.sum(skel_pred[:, 1:]) + smooth)
    tsens = (jnp.sum((skel_true * y_pred)[:, 1:]) + smooth) / (
        jnp.sum(skel_true[:, 1:]) + smooth)
    return 1.0 - 2.0 * (tprec * tsens) / (tprec + tsens)


if __name__ == "__main__":
    key = jax.random.PRNGKey(0)
    k1, k2 = jax.random.split(key)
    B, C, H, W = 2, 4, 16, 16
    # "probability map" style inputs in [0, 1]
    y_true = jax.random.uniform(k1, (B, C, H, W), dtype=jnp.float32)
    y_pred = jax.random.uniform(k2, (B, C, H, W), dtype=jnp.float32)

    out = soft_cldice(y_true, y_pred, iter_=3, smooth=1.0)
    out = jax.block_until_ready(out)

    ref = _soft_cldice_ref(y_true, y_pred, iter_=3, smooth=1.0)
    assert jnp.allclose(out, ref, atol=1e-5, rtol=1e-5), (out, ref)

    print("KERNEL_OK")
</pallas_src>

<mosaic_0001>
module attributes {stable_mosaic.version = 11 : i64} {
  func.func @_soft_cldice_partial_kernel(%arg0: i32, %arg1: i32, %arg2: memref<1x1x16x16xf32, #tpu.memory_space<vmem>>, %arg3: memref<1x1x16x16xf32, #tpu.memory_space<vmem>>, %arg4: memref<1x1x1x128xf32, #tpu.memory_space<vmem>>) attributes {dimension_semantics = [#tpu.dimension_semantics<parallel>, #tpu.dimension_semantics<parallel>], iteration_bounds = array<i64: 2, 3>, scalar_prefetch = 0 : i64, scratch_operands = 0 : i64, tpu.core_type = #tpu.core_type<tc>, window_params = [{transform_indices = @transform_0, window_bounds = array<i64: 1, 1, 16, 16>}, {transform_indices = @transform_1, window_bounds = array<i64: 1, 1, 16, 16>}, {transform_indices = @transform_2, window_bounds = array<i64: 1, 1, 1, 128>}]} {
    %c0 = arith.constant 0 : index
    %c0_0 = arith.constant 0 : index
    %c0_1 = arith.constant 0 : index
    %c0_2 = arith.constant 0 : index
    %0 = vector.load %arg2[%c0, %c0_0, %c0_1, %c0_2] : memref<1x1x16x16xf32, #tpu.memory_space<vmem>>, vector<1x1x16x16xf32>
    %1 = vector.shape_cast %0 : vector<1x1x16x16xf32> to vector<16x16xf32>
    %c0_3 = arith.constant 0 : index
    %c0_4 = arith.constant 0 : index
    %c0_5 = arith.constant 0 : index
    %c0_6 = arith.constant 0 : index
    %2 = vector.load %arg3[%c0_3, %c0_4, %c0_5, %c0_6] : memref<1x1x16x16xf32, #tpu.memory_space<vmem>>, vector<1x1x16x16xf32>
    %3 = vector.shape_cast %2 : vector<1x1x16x16xf32> to vector<16x16xf32>
    %cst = arith.constant 0x7F800000 : f32
    %4 = vector.broadcast %cst : f32 to vector<1x16xf32>
    %5 = vector.extract_strided_slice %3 {offsets = [1, 0], sizes = [15, 16], strides = [1, 1]} : vector<16x16xf32> to vector<15x16xf32>
    %6 = tpu.concatenate %5, %4 in 0 : vector<15x16xf32>, vector<1x16xf32> -> vector<16x16xf32>
    %7 = vector.extract_strided_slice %3 {offsets = [0, 0], sizes = [15, 16], strides = [1, 1]} : vector<16x16xf32> to vector<15x16xf32>
    %8 = tpu.concatenate %4, %7 in 0 : vector<1x16xf32>, vector<15x16xf32> -> vector<16x16xf32>
    %9 = arith.minimumf %8, %3 : vector<16x16xf32>
    %10 = arith.minimumf %9, %6 : vector<16x16xf32>
    %cst_7 = arith.constant 0x7F800000 : f32
    %11 = vector.broadcast %cst_7 : f32 to vector<16x1xf32>
    %12 = vector.extract_strided_slice %3 {offsets = [0, 1], sizes = [16, 15], strides = [1, 1]} : vector<16x16xf32> to vector<16x15xf32>
    %13 = tpu.concatenate %12, %11 in 1 : vector<16x15xf32>, vector<16x1xf32> -> vector<16x16xf32>
    %14 = vector.extract_strided_slice %3 {offsets = [0, 0], sizes = [16, 15], strides = [1, 1]} : vector<16x16xf32> to vector<16x15xf32>
    %15 = tpu.concatenate %11, %14 in 1 : vector<16x1xf32>, vector<16x15xf32> -> vector<16x16xf32>
    %16 = arith.minimumf %15, %3 : vector<16x16xf32>
    %17 = arith.minimumf %16, %13 : vector<16x16xf32>
    %18 = arith.minimumf %10, %17 : vector<16x16xf32>
    %cst_8 = arith.constant 0xFF800000 : f32
    %19 = vector.broadcast %cst_8 : f32 to vector<1x16xf32>
    %20 = vector.extract_strided_slice %18 {offsets = [1, 0], sizes = [15, 16], strides = [1, 1]} : vector<16x16xf32> to vector<15x16xf32>
    %21 = tpu.concatenate %20, %19 in 0 : vector<15x16xf32>, vector<1x16xf32> -> vector<16x16xf32>
    %22 = vector.extract_strided_slice %18 {offsets = [0, 0], sizes = [15, 16], strides = [1, 1]} : vector<16x16xf32> to vector<15x16xf32>
    %23 = tpu.concatenate %19, %22 in 0 : vector<1x16xf32>, vector<15x16xf32> -> vector<16x16xf32>
    %24 = arith.maximumf %23, %18 : vector<16x16xf32>
    %25 = arith.maximumf %24, %21 : vector<16x16xf32>
    %cst_9 = arith.constant 0xFF800000 : f32
    %26 = vector.broadcast %cst_9 : f32 to vector<16x1xf32>
    %27 = vector.extract_strided_slice %25 {offsets = [0, 1], sizes = [16, 15], strides = [1, 1]} : vector<16x16xf32> to vector<16x15xf32>
    %28 = tpu.concatenate %27, %26 in 1 : vector<16x15xf32>, vector<16x1xf32> -> vector<16x16xf32>
    %29 = vector.extract_strided_slice %25 {offsets = [0, 0], sizes = [16, 15], strides = [1, 1]} : vector<16x16xf32> to vector<16x15xf32>
    %30 = tpu.concatenate %26, %29 in 1 : vector<16x1xf32>, vector<16x15xf32> -> vector<16x16xf32>
    %31 = arith.maximumf %30, %25 : vector<16x16xf32>
    %32 = arith.maximumf %31, %28 : vector<16x16xf32>
    %33 = arith.subf %3, %32 : vector<16x16xf32>
    %cst_10 = arith.constant 0.000000e+00 : f32
    %34 = vector.broadcast %cst_10 : f32 to vector<16x16xf32>
    %35 = arith.maximumf %33, %34 : vector<16x16xf32>
    %cst_11 = arith.constant 0x7F800000 : f32
    %36 = vector.broadcast %cst_11 : f32 to vector<1x16xf32>
    %37 = vector.extract_strided_slice %18 {offsets = [1, 0], sizes = [15, 16], strides = [1, 1]} : vector<16x16xf32> to vector<15x16xf32>
    %38 = tpu.concatenate %37, %36 in 0 : vector<15x16xf32>, vector<1x16xf32> -> vector<16x16xf32>
    %39 = vector.extract_strided_slice %18 {offsets = [0, 0], sizes = [15, 16], strides = [1, 1]} : vector<16x16xf32> to vector<15x16xf32>
    %40 = tpu.concatenate %36, %39 in 0 : vector<1x16xf32>, vector<15x16xf32> -> vector<16x16xf32>
    %41 = arith.minimumf %40, %18 : vector<16x16xf32>
    %42 = arith.minimumf %41, %38 : vector<16x16xf32>
    %cst_12 = arith.constant 0x7F800000 : f32
    %43 = vector.broadcast %cst_12 : f32 to vector<16x1xf32>
    %44 = vector.extract_strided_slice %18 {offsets = [0, 1], sizes = [16, 15], strides = [1, 1]} : vector<16x16xf32> to vector<16x15xf32>
    %45 = tpu.concatenate %44, %43 in 1 : vector<16x15xf32>, vector<16x1xf32> -> vector<16x16xf32>
    %46 = vector.extract_strided_slice %18 {offsets = [0, 0], sizes = [16, 15], strides = [1, 1]} : vector<16x16xf32> to vector<16x15xf32>
    %47 = tpu.concatenate %43, %46 in 1 : vector<16x1xf32>, vector<16x15xf32> -> vector<16x16xf32>
    %48 = arith.minimumf %47, %18 : vector<16x16xf32>
    %49 = arith.minimumf %48, %45 : vector<16x16xf32>
    %50 = arith.minimumf %42, %49 : vector<16x16xf32>
    %cst_13 = arith.constant 0xFF800000 : f32
    %51 = vector.broadcast %cst_13 : f32 to vector<1x16xf32>
    %52 = vector.extract_strided_slice %50 {offsets = [1, 0], sizes = [15, 16], strides = [1, 1]} : vector<16x16xf32> to vector<15x16xf32>
    %53 = tpu.concatenate %52, %51 in 0 : vector<15x16xf32>, vector<1x16xf32> -> vector<16x16xf32>
    %54 = vector.extract_strided_slice %50 {offsets = [0, 0], sizes = [15, 16], strides = [1, 1]} : vector<16x16xf32> to vector<15x16xf32>
    %55 = tpu.concatenate %51, %54 in 0 : vector<1x16xf32>, vector<15x16xf32> -> vector<16x16xf32>
    %56 = arith.maximumf %55, %50 : vector<16x16xf32>
    %57 = arith.maximumf %56, %53 : vector<16x16xf32>
    %cst_14 = arith.constant 0xFF800000 : f32
    %58 = vector.broadcast %cst_14 : f32 to vector<16x1xf32>
    %59 = vector.extract_strided_slice %57 {offsets = [0, 1], sizes = [16, 15], strides = [1, 1]} : vector<16x16xf32> to vector<16x15xf32>
    %60 = tpu.concatenate %59, %58 in 1 : vector<16x15xf32>, vector<16x1xf32> -> vector<16x16xf32>
    %61 = vector.extract_strided_slice %57 {offsets = [0, 0], sizes = [16, 15], strides = [1, 1]} : vector<16x16xf32> to vector<16x15xf32>
    %62 = tpu.concatenate %58, %61 in 1 : vector<16x1xf32>, vector<16x15xf32> -> vector<16x16xf32>
    %63 = arith.maximumf %62, %57 : vector<16x16xf32>
    %64 = arith.maximumf %63, %60 : vector<16x16xf32>
    %65 = arith.subf %18, %64 : vector<16x16xf32>
    %cst_15 = arith.constant 0.000000e+00 : f32
    %66 = vector.broadcast %cst_15 : f32 to vector<16x16xf32>
    %67 = arith.maximumf %65, %66 : vector<16x16xf32>
    %68 = arith.mulf %35, %67 : vector<16x16xf32>
    %69 = arith.subf %67, %68 : vector<16x16xf32>
    %cst_16 = arith.constant 0.000000e+00 : f32
    %70 = vector.broadcast %cst_16 : f32 to vector<16x16xf32>
    %71 = arith.maximumf %69, %70 : vector<16x16xf32>
    %72 = arith.addf %35, %71 : vector<16x16xf32>
    %cst_17 = arith.constant 0x7F800000 : f32
    %73 = vector.broadcast %cst_17 : f32 to vector<1x16xf32>
    %74 = vector.extract_strided_slice %50 {offsets = [1, 0], sizes = [15, 16], strides = [1, 1]} : vector<16x16xf32> to vector<15x16xf32>
    %75 = tpu.concatenate %74, %73 in 0 : vector<15x16xf32>, vector<1x16xf32> -> vector<16x16xf32>
    %76 = vector.extract_strided_slice %50 {offsets = [0, 0], sizes = [15, 16], strides = [1, 1]} : vector<16x16xf32> to vector<15x16xf32>
    %77 = tpu.concatenate %73, %76 in 0 : vector<1x16xf32>, vector<15x16xf32> -> vector<16x16xf32>
    %78 = arith.minimumf %77, %50 : vector<16x16xf32>
    %79 = arith.minimumf %78, %75 : vector<16x16xf32>
    %cst_18 = arith.constant 0x7F800000 : f32
    %80 = vector.broadcast %cst_18 : f32 to vector<16x1xf32>
    %81 = vector.extract_strided_slice %50 {offsets = [0, 1], sizes = [16, 15], strides = [1, 1]} : vector<16x16xf32> to vector<16x15xf32>
    %82 = tpu.concatenate %81, %80 in 1 : vector<16x15xf32>, vector<16x1xf32> -> vector<16x16xf32>
    %83 = vector.extract_strided_slice %50 {offsets = [0, 0], sizes = [16, 15], strides = [1, 1]} : vector<16x16xf32> to vector<16x15xf32>
    %84 = tpu.concatenate %80, %83 in 1 : vector<16x1xf32>, vector<16x15xf32> -> vector<16x16xf32>
    %85 = arith.minimumf %84, %50 : vector<16x16xf32>
    %86 = arith.minimumf %85, %82 : vector<16x16xf32>
    %87 = arith.minimumf %79, %86 : vector<16x16xf32>
    %cst_19 = arith.constant 0xFF800000 : f32
    %88 = vector.broadcast %cst_19 : f32 to vector<1x16xf32>
    %89 = vector.extract_strided_slice %87 {offsets = [1, 0], sizes = [15, 16], strides = [1, 1]} : vector<16x16xf32> to vector<15x16xf32>
    %90 = tpu.concatenate %89, %88 in 0 : vector<15x16xf32>, vector<1x16xf32> -> vector<16x16xf32>
    %91 = vector.extract_strided_slice %87 {offsets = [0, 0], sizes = [15, 16], strides = [1, 1]} : vector<16x16xf32> to vector<15x16xf32>
    %92 = tpu.concatenate %88, %91 in 0 : vector<1x16xf32>, vector<15x16xf32> -> vector<16x16xf32>
    %93 = arith.maximumf %92, %87 : vector<16x16xf32>
    %94 = arith.maximumf %93, %90 : vector<16x16xf32>
    %cst_20 = arith.constant 0xFF800000 : f32
    %95 = vector.broadcast %cst_20 : f32 to vector<16x1xf32>
    %96 = vector.extract_strided_slice %94 {offsets = [0, 1], sizes = [16, 15], strides = [1, 1]} : vector<16x16xf32> to vector<16x15xf32>
    %97 = tpu.concatenate %96, %95 in 1 : vector<16x15xf32>, vector<16x1xf32> -> vector<16x16xf32>
    %98 = vector.extract_strided_slice %94 {offsets = [0, 0], sizes = [16, 15], strides = [1, 1]} : vector<16x16xf32> to vector<16x15xf32>
    %99 = tpu.concatenate %95, %98 in 1 : vector<16x1xf32>, vector<16x15xf32> -> vector<16x16xf32>
    %100 = arith.maximumf %99, %94 : vector<16x16xf32>
    %101 = arith.maximumf %100, %97 : vector<16x16xf32>
    %102 = arith.subf %50, %101 : vector<16x16xf32>
    %cst_21 = arith.constant 0.000000e+00 : f32
    %103 = vector.broadcast %cst_21 : f32 to vector<16x16xf32>
    %104 = arith.maximumf %102, %103 : vector<16x16xf32>
    %105 = arith.mulf %72, %104 : vector<16x16xf32>
    %106 = arith.subf %104, %105 : vector<16x16xf32>
    %cst_22 = arith.constant 0.000000e+00 : f32
    %107 = vector.broadcast %cst_22 : f32 to vector<16x16xf32>
    %108 = arith.maximumf %106, %107 : vector<16x16xf32>
    %109 = arith.addf %72, %108 : vector<16x16xf32>
    %cst_23 = arith.constant 0x7F800000 : f32
    %110 = vector.broadcast %cst_23 : f32 to vector<1x16xf32>
    %111 = vector.extract_strided_slice %87 {offsets = [1, 0], sizes = [15, 16], strides = [1, 1]} : vector<16x16xf32> to vector<15x16xf32>
    %112 = tpu.concatenate %111, %110 in 0 : vector<15x16xf32>, vector<1x16xf32> -> vector<16x16xf32>
    %113 = vector.extract_strided_slice %87 {offsets = [0, 0], sizes = [15, 16], strides = [1, 1]} : vector<16x16xf32> to vector<15x16xf32>
    %114 = tpu.concatenate %110, %113 in 0 : vector<1x16xf32>, vector<15x16xf32> -> vector<16x16xf32>
    %115 = arith.minimumf %114, %87 : vector<16x16xf32>
    %116 = arith.minimumf %115, %112 : vector<16x16xf32>
    %cst_24 = arith.constant 0x7F800000 : f32
    %117 = vector.broadcast %cst_24 : f32 to vector<16x1xf32>
    %118 = vector.extract_strided_slice %87 {offsets = [0, 1], sizes = [16, 15], strides = [1, 1]} : vector<16x16xf32> to vector<16x15xf32>
    %119 = tpu.concatenate %118, %117 in 1 : vector<16x15xf32>, vector<16x1xf32> -> vector<16x16xf32>
    %120 = vector.extract_strided_slice %87 {offsets = [0, 0], sizes = [16, 15], strides = [1, 1]} : vector<16x16xf32> to vector<16x15xf32>
    %121 = tpu.concatenate %117, %120 in 1 : vector<16x1xf32>, vector<16x15xf32> -> vector<16x16xf32>
    %122 = arith.minimumf %121, %87 : vector<16x16xf32>
    %123 = arith.minimumf %122, %119 : vector<16x16xf32>
    %124 = arith.minimumf %116, %123 : vector<16x16xf32>
    %cst_25 = arith.constant 0xFF800000 : f32
    %125 = vector.broadcast %cst_25 : f32 to vector<1x16xf32>
    %126 = vector.extract_strided_slice %124 {offsets = [1, 0], sizes = [15, 16], strides = [1, 1]} : vector<16x16xf32> to vector<15x16xf32>
    %127 = tpu.concatenate %126, %125 in 0 : vector<15x16xf32>, vector<1x16xf32> -> vector<16x16xf32>
    %128 = vector.extract_strided_slice %124 {offsets = [0, 0], sizes = [15, 16], strides = [1, 1]} : vector<16x16xf32> to vector<15x16xf32>
    %129 = tpu.concatenate %125, %128 in 0 : vector<1x16xf32>, vector<15x16xf32> -> vector<16x16xf32>
    %130 = arith.maximumf %129, %124 : vector<16x16xf32>
    %131 = arith.maximumf %130, %127 : vector<16x16xf32>
    %cst_26 = arith.constant 0xFF800000 : f32
    %132 = vector.broadcast %cst_26 : f32 to vector<16x1xf32>
    %133 = vector.extract_strided_slice %131 {offsets = [0, 1], sizes = [16, 15], strides = [1, 1]} : vector<16x16xf32> to vector<16x15xf32>
    %134 = tpu.concatenate %133, %132 in 1 : vector<16x15xf32>, vector<16x1xf32> -> vector<16x16xf32>
    %135 = vector.extract_strided_slice %131 {offsets = [0, 0], sizes = [16, 15], strides = [1, 1]} : vector<16x16xf32> to vector<16x15xf32>
    %136 = tpu.concatenate %132, %135 in 1 : vector<16x1xf32>, vector<16x15xf32> -> vector<16x16xf32>
    %137 = arith.maximumf %136, %131 : vector<16x16xf32>
    %138 = arith.maximumf %137, %134 : vector<16x16xf32>
    %139 = arith.subf %87, %138 : vector<16x16xf32>
    %cst_27 = arith.constant 0.000000e+00 : f32
    %140 = vector.broadcast %cst_27 : f32 to vector<16x16xf32>
    %141 = arith.maximumf %139, %140 : vector<16x16xf32>
    %142 = arith.mulf %109, %141 : vector<16x16xf32>
    %143 = arith.subf %141, %142 : vector<16x16xf32>
    %cst_28 = arith.constant 0.000000e+00 : f32
    %144 = vector.broadcast %cst_28 : f32 to vector<16x16xf32>
    %145 = arith.maximumf %143, %144 : vector<16x16xf32>
    %146 = arith.addf %109, %145 : vector<16x16xf32>
    %147 = arith.mulf %146, %1 : vector<16x16xf32>
    %148 = vector.shape_cast %147 : vector<16x16xf32> to vector<1x16x16xf32>
    %cst_29 = arith.constant dense<0.000000e+00> : vector<1xf32>
    %149 = vector.multi_reduction <add>, %148, %cst_29 [1, 2] : vector<1x16x16xf32> to vector<1xf32>
    %150 = vector.shape_cast %149 : vector<1xf32> to vector<1x1x1xf32>
    %151 = vector.extract %150[0, 0, 0] : f32 from vector<1x1x1xf32>
    %152 = vector.shape_cast %146 : vector<16x16xf32> to vector<1x16x16xf32>
    %cst_30 = arith.constant dense<0.000000e+00> : vector<1xf32>
    %153 = vector.multi_reduction <add>, %152, %cst_30 [1, 2] : vector<1x16x16xf32> to vector<1xf32>
    %154 = vector.shape_cast %153 : vector<1xf32> to vector<1x1x1xf32>
    %155 = vector.extract %154[0, 0, 0] : f32 from vector<1x1x1xf32>
    %cst_31 = arith.constant 0x7F800000 : f32
    %156 = vector.broadcast %cst_31 : f32 to vector<1x16xf32>
    %157 = vector.extract_strided_slice %1 {offsets = [1, 0], sizes = [15, 16], strides = [1, 1]} : vector<16x16xf32> to vector<15x16xf32>
    %158 = tpu.concatenate %157, %156 in 0 : vector<15x16xf32>, vector<1x16xf32> -> vector<16x16xf32>
    %159 = vector.extract_strided_slice %1 {offsets = [0, 0], sizes = [15, 16], strides = [1, 1]} : vector<16x16xf32> to vector<15x16xf32>
    %160 = tpu.concatenate %156, %159 in 0 : vector<1x16xf32>, vector<15x16xf32> -> vector<16x16xf32>
    %161 = arith.minimumf %160, %1 : vector<16x16xf32>
    %162 = arith.minimumf %161, %158 : vector<16x16xf32>
    %cst_32 = arith.constant 0x7F800000 : f32
    %163 = vector.broadcast %cst_32 : f32 to vector<16x1xf32>
    %164 = vector.extract_strided_slice %1 {offsets = [0, 1], sizes = [16, 15], strides = [1, 1]} : vector<16x16xf32> to vector<16x15xf32>
    %165 = tpu.concatenate %164, %163 in 1 : vector<16x15xf32>, vector<16x1xf32> -> vector<16x16xf32>
    %166 = vector.extract_strided_slice %1 {offsets = [0, 0], sizes = [16, 15], strides = [1, 1]} : vector<16x16xf32> to vector<16x15xf32>
    %167 = tpu.concatenate %163, %166 in 1 : vector<16x1xf32>, vector<16x15xf32> -> vector<16x16xf32>
    %168 = arith.minimumf %167, %1 : vector<16x16xf32>
    %169 = arith.minimumf %168, %165 : vector<16x16xf32>
    %170 = arith.minimumf %162, %169 : vector<16x16xf32>
    %cst_33 = arith.constant 0xFF800000 : f32
    %171 = vector.broadcast %cst_33 : f32 to vector<1x16xf32>
    %172 = vector.extract_strided_slice %170 {offsets = [1, 0], sizes = [15, 16], strides = [1, 1]} : vector<16x16xf32> to vector<15x16xf32>
    %173 = tpu.concatenate %172, %171 in 0 : vector<15x16xf32>, vector<1x16xf32> -> vector<16x16xf32>
    %174 = vector.extract_strided_slice %170 {offsets = [0, 0], sizes = [15, 16], strides = [1, 1]} : vector<16x16xf32> to vector<15x16xf32>
    %175 = tpu.concatenate %171, %174 in 0 : vector<1x16xf32>, vector<15x16xf32> -> vector<16x16xf32>
    %176 = arith.maximumf %175, %170 : vector<16x16xf32>
    %177 = arith.maximumf %176, %173 : vector<16x16xf32>
    %cst_34 = arith.constant 0xFF800000 : f32
    %178 = vector.broadcast %cst_34 : f32 to vector<16x1xf32>
    %179 = vector.extract_strided_slice %177 {offsets = [0, 1], sizes = [16, 15], strides = [1, 1]} : vector<16x16xf32> to vector<16x15xf32>
    %180 = tpu.concatenate %179, %178 in 1 : vector<16x15xf32>, vector<16x1xf32> -> vector<16x16xf32>
    %181 = vector.extract_strided_slice %177 {offsets = [0, 0], sizes = [16, 15], strides = [1, 1]} : vector<16x16xf32> to vector<16x15xf32>
    %182 = tpu.concatenate %178, %181 in 1 : vector<16x1xf32>, vector<16x15xf32> -> vector<16x16xf32>
    %183 = arith.maximumf %182, %177 : vector<16x16xf32>
    %184 = arith.maximumf %183, %180 : vector<16x16xf32>
    %185 = arith.subf %1, %184 : vector<16x16xf32>
    %cst_35 = arith.constant 0.000000e+00 : f32
    %186 = vector.broadcast %cst_35 : f32 to vector<16x16xf32>
    %187 = arith.maximumf %185, %186 : vector<16x16xf32>
    %cst_36 = arith.constant 0x7F800000 : f32
    %188 = vector.broadcast %cst_36 : f32 to vector<1x16xf32>
    %189 = vector.extract_strided_slice %170 {offsets = [1, 0], sizes = [15, 16], strides = [1, 1]} : vector<16x16xf32> to vector<15x16xf32>
    %190 = tpu.concatenate %189, %188 in 0 : vector<15x16xf32>, vector<1x16xf32> -> vector<16x16xf32>
    %191 = vector.extract_strided_slice %170 {offsets = [0, 0], sizes = [15, 16], strides = [1, 1]} : vector<16x16xf32> to vector<15x16xf32>
    %192 = tpu.concatenate %188, %191 in 0 : vector<1x16xf32>, vector<15x16xf32> -> vector<16x16xf32>
    %193 = arith.minimumf %192, %170 : vector<16x16xf32>
    %194 = arith.minimumf %193, %190 : vector<16x16xf32>
    %cst_37 = arith.constant 0x7F800000 : f32
    %195 = vector.broadcast %cst_37 : f32 to vector<16x1xf32>
    %196 = vector.extract_strided_slice %170 {offsets = [0, 1], sizes = [16, 15], strides = [1, 1]} : vector<16x16xf32> to vector<16x15xf32>
    %197 = tpu.concatenate %196, %195 in 1 : vector<16x15xf32>, vector<16x1xf32> -> vector<16x16xf32>
    %198 = vector.extract_strided_slice %170 {offsets = [0, 0], sizes = [16, 15], strides = [1, 1]} : vector<16x16xf32> to vector<16x15xf32>
    %199 = tpu.concatenate %195, %198 in 1 : vector<16x1xf32>, vector<16x15xf32> -> vector<16x16xf32>
    %200 = arith.minimumf %199, %170 : vector<16x16xf32>
    %201 = arith.minimumf %200, %197 : vector<16x16xf32>
    %202 = arith.minimumf %194, %201 : vector<16x16xf32>
    %cst_38 = arith.constant 0xFF800000 : f32
    %203 = vector.broadcast %cst_38 : f32 to vector<1x16xf32>
    %204 = vector.extract_strided_slice %202 {offsets = [1, 0], sizes = [15, 16], strides = [1, 1]} : vector<16x16xf32> to vector<15x16xf32>
    %205 = tpu.concatenate %204, %203 in 0 : vector<15x16xf32>, vector<1x16xf32> -> vector<16x16xf32>
    %206 = vector.extract_strided_slice %202 {offsets = [0, 0], sizes = [15, 16], strides = [1, 1]} : vector<16x16xf32> to vector<15x16xf32>
    %207 = tpu.concatenate %203, %206 in 0 : vector<1x16xf32>, vector<15x16xf32> -> vector<16x16xf32>
    %208 = arith.maximumf %207, %202 : vector<16x16xf32>
    %209 = arith.maximumf %208, %205 : vector<16x16xf32>
    %cst_39 = arith.constant 0xFF800000 : f32
    %210 = vector.broadcast %cst_39 : f32 to vector<16x1xf32>
    %211 = vector.extract_strided_slice %209 {offsets = [0, 1], sizes = [16, 15], strides = [1, 1]} : vector<16x16xf32> to vector<16x15xf32>
    %212 = tpu.concatenate %211, %210 in 1 : vector<16x15xf32>, vector<16x1xf32> -> vector<16x16xf32>
    %213 = vector.extract_strided_slice %209 {offsets = [0, 0], sizes = [16, 15], strides = [1, 1]} : vector<16x16xf32> to vector<16x15xf32>
    %214 = tpu.concatenate %210, %213 in 1 : vector<16x1xf32>, vector<16x15xf32> -> vector<16x16xf32>
    %215 = arith.maximumf %214, %209 : vector<16x16xf32>
    %216 = arith.maximumf %215, %212 : vector<16x16xf32>
    %217 = arith.subf %170, %216 : vector<16x16xf32>
    %cst_40 = arith.constant 0.000000e+00 : f32
    %218 = vector.broadcast %cst_40 : f32 to vector<16x16xf32>
    %219 = arith.maximumf %217, %218 : vector<16x16xf32>
    %220 = arith.mulf %187, %219 : vector<16x16xf32>
    %221 = arith.subf %219, %220 : vector<16x16xf32>
    %cst_41 = arith.constant 0.000000e+00 : f32
    %222 = vector.broadcast %cst_41 : f32 to vector<16x16xf32>
    %223 = arith.maximumf %221, %222 : vector<16x16xf32>
    %224 = arith.addf %187, %223 : vector<16x16xf32>
    %cst_42 = arith.constant 0x7F800000 : f32
    %225 = vector.broadcast %cst_42 : f32 to vector<1x16xf32>
    %226 = vector.extract_strided_slice %202 {offsets = [1, 0], sizes = [15, 16], strides = [1, 1]} : vector<16x16xf32> to vector<15x16xf32>
    %227 = tpu.concatenate %226, %225 in 0 : vector<15x16xf32>, vector<1x16xf32> -> vector<16x16xf32>
    %228 = vector.extract_strided_slice %202 {offsets = [0, 0], sizes = [15, 16], strides = [1, 1]} : vector<16x16xf32> to vector<15x16xf32>
    %229 = tpu.concatenate %225, %228 in 0 : vector<1x16xf32>, vector<15x16xf32> -> vector<16x16xf32>
    %230 = arith.minimumf %229, %202 : vector<16x16xf32>
    %231 = arith.minimumf %230, %227 : vector<16x16xf32>
    %cst_43 = arith.constant 0x7F800000 : f32
    %232 = vector.broadcast %cst_43 : f32 to vector<16x1xf32>
    %233 = vector.extract_strided_slice %202 {offsets = [0, 1], sizes = [16, 15], strides = [1, 1]} : vector<16x16xf32> to vector<16x15xf32>
    %234 = tpu.concatenate %233, %232 in 1 : vector<16x15xf32>, vector<16x1xf32> -> vector<16x16xf32>
    %235 = vector.extract_strided_slice %202 {offsets = [0, 0], sizes = [16, 15], strides = [1, 1]} : vector<16x16xf32> to vector<16x15xf32>
    %236 = tpu.concatenate %232, %235 in 1 : vector<16x1xf32>, vector<16x15xf32> -> vector<16x16xf32>
    %237 = arith.minimumf %236, %202 : vector<16x16xf32>
    %238 = arith.minimumf %237, %234 : vector<16x16xf32>
    %239 = arith.minimumf %231, %238 : vector<16x16xf32>
    %cst_44 = arith.constant 0xFF800000 : f32
    %240 = vector.broadcast %cst_44 : f32 to vector<1x16xf32>
    %241 = vector.extract_strided_slice %239 {offsets = [1, 0], sizes = [15, 16], strides = [1, 1]} : vector<16x16xf32> to vector<15x16xf32>
    %242 = tpu.concatenate %241, %240 in 0 : vector<15x16xf32>, vector<1x16xf32> -> vector<16x16xf32>
    %243 = vector.extract_strided_slice %239 {offsets = [0, 0], sizes = [15, 16], strides = [1, 1]} : vector<16x16xf32> to vector<15x16xf32>
    %244 = tpu.concatenate %240, %243 in 0 : vector<1x16xf32>, vector<15x16xf32> -> vector<16x16xf32>
    %245 = arith.maximumf %244, %239 : vector<16x16xf32>
    %246 = arith.maximumf %245, %242 : vector<16x16xf32>
    %cst_45 = arith.constant 0xFF800000 : f32
    %247 = vector.broadcast %cst_45 : f32 to vector<16x1xf32>
    %248 = vector.extract_strided_slice %246 {offsets = [0, 1], sizes = [16, 15], strides = [1, 1]} : vector<16x16xf32> to vector<16x15xf32>
    %249 = tpu.concatenate %248, %247 in 1 : vector<16x15xf32>, vector<16x1xf32> -> vector<16x16xf32>
    %250 = vector.extract_strided_slice %246 {offsets = [0, 0], sizes = [16, 15], strides = [1, 1]} : vector<16x16xf32> to vector<16x15xf32>
    %251 = tpu.concatenate %247, %250 in 1 : vector<16x1xf32>, vector<16x15xf32> -> vector<16x16xf32>
    %252 = arith.maximumf %251, %246 : vector<16x16xf32>
    %253 = arith.maximumf %252, %249 : vector<16x16xf32>
    %254 = arith.subf %202, %253 : vector<16x16xf32>
    %cst_46 = arith.constant 0.000000e+00 : f32
    %255 = vector.broadcast %cst_46 : f32 to vector<16x16xf32>
    %256 = arith.maximumf %254, %255 : vector<16x16xf32>
    %257 = arith.mulf %224, %256 : vector<16x16xf32>
    %258 = arith.subf %256, %257 : vector<16x16xf32>
    %cst_47 = arith.constant 0.000000e+00 : f32
    %259 = vector.broadcast %cst_47 : f32 to vector<16x16xf32>
    %260 = arith.maximumf %258, %259 : vector<16x16xf32>
    %261 = arith.addf %224, %260 : vector<16x16xf32>
    %cst_48 = arith.constant 0x7F800000 : f32
    %262 = vector.broadcast %cst_48 : f32 to vector<1x16xf32>
    %263 = vector.extract_strided_slice %239 {offsets = [1, 0], sizes = [15, 16], strides = [1, 1]} : vector<16x16xf32> to vector<15x16xf32>
    %264 = tpu.concatenate %263, %262 in 0 : vector<15x16xf32>, vector<1x16xf32> -> vector<16x16xf32>
    %265 = vector.extract_strided_slice %239 {offsets = [0, 0], sizes = [15, 16], strides = [1, 1]} : vector<16x16xf32> to vector<15x16xf32>
    %266 = tpu.concatenate %262, %265 in 0 : vector<1x16xf32>, vector<15x16xf32> -> vector<16x16xf32>
    %267 = arith.minimumf %266, %239 : vector<16x16xf32>
    %268 = arith.minimumf %267, %264 : vector<16x16xf32>
    %cst_49 = arith.constant 0x7F800000 : f32
    %269 = vector.broadcast %cst_49 : f32 to vector<16x1xf32>
    %270 = vector.extract_strided_slice %239 {offsets = [0, 1], sizes = [16, 15], strides = [1, 1]} : vector<16x16xf32> to vector<16x15xf32>
    %271 = tpu.concatenate %270, %269 in 1 : vector<16x15xf32>, vector<16x1xf32> -> vector<16x16xf32>
    %272 = vector.extract_strided_slice %239 {offsets = [0, 0], sizes = [16, 15], strides = [1, 1]} : vector<16x16xf32> to vector<16x15xf32>
    %273 = tpu.concatenate %269, %272 in 1 : vector<16x1xf32>, vector<16x15xf32> -> vector<16x16xf32>
    %274 = arith.minimumf %273, %239 : vector<16x16xf32>
    %275 = arith.minimumf %274, %271 : vector<16x16xf32>
    %276 = arith.minimumf %268, %275 : vector<16x16xf32>
    %cst_50 = arith.constant 0xFF800000 : f32
    %277 = vector.broadcast %cst_50 : f32 to vector<1x16xf32>
    %278 = vector.extract_strided_slice %276 {offsets = [1, 0], sizes = [15, 16], strides = [1, 1]} : vector<16x16xf32> to vector<15x16xf32>
    %279 = tpu.concatenate %278, %277 in 0 : vector<15x16xf32>, vector<1x16xf32> -> vector<16x16xf32>
    %280 = vector.extract_strided_slice %276 {offsets = [0, 0], sizes = [15, 16], strides = [1, 1]} : vector<16x16xf32> to vector<15x16xf32>
    %281 = tpu.concatenate %277, %280 in 0 : vector<1x16xf32>, vector<15x16xf32> -> vector<16x16xf32>
    %282 = arith.maximumf %281, %276 : vector<16x16xf32>
    %283 = arith.maximumf %282, %279 : vector<16x16xf32>
    %cst_51 = arith.constant 0xFF800000 : f32
    %284 = vector.broadcast %cst_51 : f32 to vector<16x1xf32>
    %285 = vector.extract_strided_slice %283 {offsets = [0, 1], sizes = [16, 15], strides = [1, 1]} : vector<16x16xf32> to vector<16x15xf32>
    %286 = tpu.concatenate %285, %284 in 1 : vector<16x15xf32>, vector<16x1xf32> -> vector<16x16xf32>
    %287 = vector.extract_strided_slice %283 {offsets = [0, 0], sizes = [16, 15], strides = [1, 1]} : vector<16x16xf32> to vector<16x15xf32>
    %288 = tpu.concatenate %284, %287 in 1 : vector<16x1xf32>, vector<16x15xf32> -> vector<16x16xf32>
    %289 = arith.maximumf %288, %283 : vector<16x16xf32>
    %290 = arith.maximumf %289, %286 : vector<16x16xf32>
    %291 = arith.subf %239, %290 : vector<16x16xf32>
    %cst_52 = arith.constant 0.000000e+00 : f32
    %292 = vector.broadcast %cst_52 : f32 to vector<16x16xf32>
    %293 = arith.maximumf %291, %292 : vector<16x16xf32>
    %294 = arith.mulf %261, %293 : vector<16x16xf32>
    %295 = arith.subf %293, %294 : vector<16x16xf32>
    %cst_53 = arith.constant 0.000000e+00 : f32
    %296 = vector.broadcast %cst_53 : f32 to vector<16x16xf32>
    %297 = arith.maximumf %295, %296 : vector<16x16xf32>
    %298 = arith.addf %261, %297 : vector<16x16xf32>
    %299 = arith.mulf %298, %3 : vector<16x16xf32>
    %300 = vector.shape_cast %299 : vector<16x16xf32> to vector<1x16x16xf32>
    %cst_54 = arith.constant dense<0.000000e+00> : vector<1xf32>
    %301 = vector.multi_reduction <add>, %300, %cst_54 [1, 2] : vector<1x16x16xf32> to vector<1xf32>
    %302 = vector.shape_cast %301 : vector<1xf32> to vector<1x1x1xf32>
    %303 = vector.extract %302[0, 0, 0] : f32 from vector<1x1x1xf32>
    %304 = vector.shape_cast %298 : vector<16x16xf32> to vector<1x16x16xf32>
    %cst_55 = arith.constant dense<0.000000e+00> : vector<1xf32>
    %305 = vector.multi_reduction <add>, %304, %cst_55 [1, 2] : vector<1x16x16xf32> to vector<1xf32>
    %306 = vector.shape_cast %305 : vector<1xf32> to vector<1x1x1xf32>
    %307 = vector.extract %306[0, 0, 0] : f32 from vector<1x1x1xf32>
    %308 = tpu.iota {dimensions = array<i32: 1>} : vector<1x128xi32>
    %c0_i32 = arith.constant 0 : i32
    %309 = vector.broadcast %c0_i32 : i32 to vector<1x128xi32>
    %310 = arith.cmpi eq, %308, %309 : vector<1x128xi32>
    %cst_56 = arith.constant 0.000000e+00 : f32
    %311 = vector.broadcast %151 : f32 to vector<1x128xf32>
    %312 = vector.broadcast %cst_56 : f32 to vector<1x128xf32>
    %313 = arith.select %310, %311, %312 : vector<1x128xi1>, vector<1x128xf32>
    %c1_i32 = arith.constant 1 : i32
    %314 = vector.broadcast %c1_i32 : i32 to vector<1x128xi32>
    %315 = arith.cmpi eq, %308, %314 : vector<1x128xi32>
    %cst_57 = arith.constant 0.000000e+00 : f32
    %316 = vector.broadcast %155 : f32 to vector<1x128xf32>
    %317 = vector.broadcast %cst_57 : f32 to vector<1x128xf32>
    %318 = arith.select %315, %316, %317 : vector<1x128xi1>, vector<1x128xf32>
    %319 = arith.addf %313, %318 : vector<1x128xf32>
    %c2_i32 = arith.constant 2 : i32
    %320 = vector.broadcast %c2_i32 : i32 to vector<1x128xi32>
    %321 = arith.cmpi eq, %308, %320 : vector<1x128xi32>
    %cst_58 = arith.constant 0.000000e+00 : f32
    %322 = vector.broadcast %303 : f32 to vector<1x128xf32>
    %323 = vector.broadcast %cst_58 : f32 to vector<1x128xf32>
    %324 = arith.select %321, %322, %323 : vector<1x128xi1>, vector<1x128xf32>
    %325 = arith.addf %319, %324 : vector<1x128xf32>
    %c3_i32 = arith.constant 3 : i32
    %326 = vector.broadcast %c3_i32 : i32 to vector<1x128xi32>
    %327 = arith.cmpi eq, %308, %326 : vector<1x128xi32>
    %cst_59 = arith.constant 0.000000e+00 : f32
    %328 = vector.broadcast %307 : f32 to vector<1x128xf32>
    %329 = vector.broadcast %cst_59 : f32 to vector<1x128xf32>
    %330 = arith.select %327, %328, %329 : vector<1x128xi1>, vector<1x128xf32>
    %331 = arith.addf %325, %330 : vector<1x128xf32>
    %332 = vector.shape_cast %331 : vector<1x128xf32> to vector<1x1x1x128xf32>
    %c0_60 = arith.constant 0 : index
    %c0_61 = arith.constant 0 : index
    %c0_62 = arith.constant 0 : index
    %c0_63 = arith.constant 0 : index
    %333 = vector.load %arg4[%c0_60, %c0_61, %c0_62, %c0_63] : memref<1x1x1x128xf32, #tpu.memory_space<vmem>>, vector<1x1x1x128xf32>
    tpu.vector_store %arg4[%c0_60, %c0_61, %c0_62, %c0_63], %332 {strides = array<i32>} : memref<1x1x1x128xf32, #tpu.memory_space<vmem>>, vector<1x1x1x128xf32>,
    return
  }
  func.func @transform_0(%arg0: i32, %arg1: i32) -> (i32, i32, i32, i32) {
    %c1_i32 = arith.constant 1 : i32
    %0 = arith.addi %arg1, %c1_i32 : i32
    %c0_i32 = arith.constant 0 : i32
    %c0_i32_0 = arith.constant 0 : i32
    %c0_i32_1 = arith.constant 0 : i32
    return %arg0, %0, %c0_i32, %c0_i32_0 : i32, i32, i32, i32
  }
  func.func @transform_1(%arg0: i32, %arg1: i32) -> (i32, i32, i32, i32) {
    %c1_i32 = arith.constant 1 : i32
    %0 = arith.addi %arg1, %c1_i32 : i32
    %c0_i32 = arith.constant 0 : i32
    %c0_i32_0 = arith.constant 0 : i32
    %c0_i32_1 = arith.constant 0 : i32
    return %arg0, %0, %c0_i32, %c0_i32_0 : i32, i32, i32, i32
  }
  func.func @transform_2(%arg0: i32, %arg1: i32) -> (i32, i32, i32, i32) {
    %c0_i32 = arith.constant 0 : i32
    %c0_i32_0 = arith.constant 0 : i32
    %c0_i32_1 = arith.constant 0 : i32
    return %arg0, %arg1, %c0_i32, %c0_i32_0 : i32, i32, i32, i32
  }
}

</mosaic_0001>

<llo_original>
// kernel: tpu_custom_call.1
$region0: #{tpu_custom_call.1}
  #allocation0 [shape = 'u32[]', space=smem, size = 0x4, offset = 0x4, fixed_abs, tag = 'smem constant byte address 0x4 - core index']
  #allocation1 [shape = 'u32[144,128]{1,0:T(1,128)}', space=vmem, size = 0x12000, scoped, tag = 'internal scratch']
  %s0 = inlined_call_operand.hbm [shape: f32[2,4,16,16], index: 0, kind: input, shape index: {}]
  %s1 = inlined_call_operand.hbm [shape: f32[2,4,16,16], index: 1, kind: input, shape index: {}]
  %s2 = inlined_call_operand.hbm [shape: f32[2,3,1,128], index: 2, kind: output, shape index: {}]
  %s3 = sld [smem:[#allocation0]]
  $region49: #{tpu_custom_call.1} parent=0
    _
  %s5 = ssub.s32 1, %s3
  %s6 = scalar_select 0, %s5, %s3
  $region1: #{tpu_custom_call.1} parent=0
    #allocation2 [shape = 'u8[16384]{0}', space=vmem, size = 0x4000, scoped, tag = 'input window, operand 0']
    #allocation3 [shape = 's32[2]{0}', space=sflag, size = 0x8, scoped, tag = 'scoped memory for tpu_custom_call.1']
    #allocation4 [shape = 's32[2]{0}', space=sflag, size = 0x8, scoped, tag = 'scoped memory for tpu_custom_call.1']
    #allocation5 [shape = 'u8[16384]{0}', space=vmem, size = 0x4000, scoped, tag = 'input window, operand 1']
    #allocation6 [shape = 's32[2]{0}', space=sflag, size = 0x8, scoped, tag = 'scoped memory for tpu_custom_call.1']
    #allocation7 [shape = 'u8[1024]{0}', space=vmem, size = 0x400, scoped, tag = 'output window, operand 0']
    %7 = vsyncpa [#allocation3], 0
    %s8 = scalar_lea.sflag [#allocation3], 1
    %9 = vsyncpa %s8, 0
    %10 = vsyncpa [#allocation6], 0
    %s11 = scalar_lea.sflag [#allocation6], 1
    %12 = vsyncpa %s11, 0
    %13 = vsyncpa [#allocation4], 0
    %s14 = scalar_lea.sflag [#allocation4], 1
    %15 = vsyncpa %s14, 0
    loop: start=0, step=1, limit=8
    $region2: #{tpu_custom_call.1} parent=1 // loop_pre_header
      _
    $region3: #{tpu_custom_call.1} parent=1 // loop_header
      %s17 = sphi 0, %s21
      %p18 = scmp.ge.s32.totalorder %s17, 8
      %s24 = sphi 0, %s36
      %s25 = sphi 0, %s32
      %s26 = sphi 0, %s24
      %s27 = sphi 0, %s25
      %s28 = sphi 0, %s26
      %s29 = sphi 0, %s27
      %s43 = sphi 0, %s45
      %s46 = sphi 0, %s43
      %s47 = sphi 0, %s46
      %s63 = sphi 0, %s47
      %s73 = sphi 0, %s75
      %s76 = sphi 0, %s73
      %s77 = sphi 0, %s76
      %s93 = sphi 0, %s77
      %s101 = sphi 0, %s103
      %s104 = sphi 0, %s101
      %s105 = sphi 0, %s104
      %s121 = sphi 0, %s105
    $region4: #{tpu_custom_call.1} parent=1 // loop_header_branch
      %20 = sbr.rel (%p18) target = $region8
    $region5: #{tpu_custom_call.1} parent=1 // loop_body
      %s22 = ssub.s32 %s17, 1
      %s23 = ssub.s32 %s17, 2
      %s30 = sadd.s32 1, %s25
      %p31 = scmp.ge.s32.totalorder %s30, 3
      %s32 = scalar_select %p31, 0, %s30
      %s33 = sadd.s32 1, %s24
      %s34 = scalar_select %p31, %s33, %s24
      %p35 = scmp.ge.s32.totalorder %s34, 2
      %s36 = scalar_select %p35, 0, %s34
      %s37 = sadd.s32 %s25, 1
      %s38 = sadd.s32 %s32, 1
      %s39 = ssub.s32 %s24, %s36
      %s40 = ssub.s32 %s37, %s38
      %s41 = sor.u32 %s39, %s40
      %p42 = scmp.eq.s32.totalorder %s41, 0
      %s44 = sadd.s32 %s43, 1
      %s45 = scalar_select %p42, %s43, %s44
      %p48 = pneg %p42
      %p49 = scmp.eq.s32.totalorder %s17, 5
      %p50 = por %p48, %p49
      %p51 = scmp.ne.s32.totalorder %s43, %s46
      %p52 = scmp.eq.s32.totalorder %s17, 0
      %p53 = por %p51, %p52
      %p54 = scmp.ne.s32.totalorder %s43, %s46
      %p55 = scmp.eq.s32.totalorder %s22, 5
      %p56 = por %p54, %p55
      %p57 = scmp.ne.s32.totalorder %s46, %s47
      %p58 = scmp.eq.s32.totalorder %s22, 0
      %p59 = por %p57, %p58
      %p60 = scmp.ne.s32.totalorder %s46, %s47
      %p61 = scmp.eq.s32.totalorder %s23, 5
      %p62 = por %p60, %p61
      %p64 = scmp.ne.s32.totalorder %s47, %s63
      %p65 = scmp.eq.s32.totalorder %s23, 0
      %p66 = por %p64, %p65
      %s67 = sadd.s32 %s25, 1
      %s68 = sadd.s32 %s32, 1
      %s69 = ssub.s32 %s24, %s36
      %s70 = ssub.s32 %s67, %s68
      %s71 = sor.u32 %s69, %s70
      %p72 = scmp.eq.s32.totalorder %s71, 0
      %s74 = sadd.s32 %s73, 1
      %s75 = scalar_select %p72, %s73, %s74
      %p78 = pneg %p72
      %p79 = scmp.eq.s32.totalorder %s17, 5
      %p80 = por %p78, %p79
      %p81 = scmp.ne.s32.totalorder %s73, %s76
      %p82 = scmp.eq.s32.totalorder %s17, 0
      %p83 = por %p81, %p82
      %p84 = scmp.ne.s32.totalorder %s73, %s76
      %p85 = scmp.eq.s32.totalorder %s22, 5
      %p86 = por %p84, %p85
      %p87 = scmp.ne.s32.totalorder %s76, %s77
      %p88 = scmp.eq.s32.totalorder %s22, 0
      %p89 = por %p87, %p88
      %p90 = scmp.ne.s32.totalorder %s76, %s77
      %p91 = scmp.eq.s32.totalorder %s23, 5
      %p92 = por %p90, %p91
      %p94 = scmp.ne.s32.totalorder %s77, %s93
      %p95 = scmp.eq.s32.totalorder %s23, 0
      %p96 = por %p94, %p95
      %s97 = ssub.s32 %s24, %s36
      %s98 = ssub.s32 %s25, %s32
      %s99 = sor.u32 %s97, %s98
      %p100 = scmp.eq.s32.totalorder %s99, 0
      %s102 = sadd.s32 %s101, 1
      %s103 = scalar_select %p100, %s101, %s102
      %p106 = pneg %p100
      %p107 = scmp.eq.s32.totalorder %s17, 5
      %p108 = por %p106, %p107
      %p109 = scmp.ne.s32.totalorder %s101, %s104
      %p110 = scmp.eq.s32.totalorder %s17, 0
      %p111 = por %p109, %p110
      %p112 = scmp.ne.s32.totalorder %s101, %s104
      %p113 = scmp.eq.s32.totalorder %s22, 5
      %p114 = por %p112, %p113
      %p115 = scmp.ne.s32.totalorder %s104, %s105
      %p116 = scmp.eq.s32.totalorder %s22, 0
      %p117 = por %p115, %p116
      %p118 = scmp.ne.s32.totalorder %s104, %s105
      %p119 = scmp.eq.s32.totalorder %s23, 5
      %p120 = por %p118, %p119
      %p122 = scmp.ne.s32.totalorder %s105, %s121
      %p123 = scmp.eq.s32.totalorder %s23, 0
      %p124 = por %p122, %p123
      %p125 = scmp.le.s32.totalorder 1, %s17
      %p126 = scmp.lt.s32.totalorder %s17, 7
      %p127 = pnand %p125, %p126
      %p128 = pneg %p127
      // Predicated region
      $region9: #{tpu_custom_call.1} parent=5 // pred_check
        _
      $region10: #{tpu_custom_call.1} parent=5 // pred_check_branch
        %130 = sbr.rel (%p127) target = $region12
      $region11: #{tpu_custom_call.1} parent=5 // pred_region
        %s131 = ssub.s32 %s17, 1
      $region12: #{tpu_custom_call.1} parent=5 // pred_fallthru
        _
      %p132 = scmp.lt.s32.totalorder %s17, 6
      // Predicated region
      $region13: #{tpu_custom_call.1} parent=5 // pred_check
        %p133 = pneg %p132
      $region14: #{tpu_custom_call.1} parent=5 // pred_check_branch
        %135 = sbr.rel (%p133) target = $region16
      $region15: #{tpu_custom_call.1} parent=5 // pred_region
        // Predicated region
        $region17: #{tpu_custom_call.1} parent=15 // pred_check
          %p136 = pneg %p53
        $region18: #{tpu_custom_call.1} parent=15 // pred_check_branch
          %138 = sbr.rel (%p136) target = $region20
        $region19: #{tpu_custom_call.1} parent=15 // pred_region
          %s139 = sand.u32 %s43, 1
          %s140 = scalar_lea.sflag [#allocation3], %s139
          %s141 = sand.u32 %s43, 1
          %s142 = smul.addr %s141, 16
          %s143 = scalar_lea.vmem [#allocation2], %s142
          %s144 = sadd.s32 %s25, 1
          %s146 = ssub.s32 256, 256
          %147 = vsyncadd %s140, %s146
          %s148 = smul.addr %s144, 2
          %s149 = smul.addr %s24, 8
          %s150 = sadd.s32 %s148, %s149
          %s151 = smul.addr %s150, 128
          %s152 = scalar_lea.hbm %s0, %s151
          %s153 = sshll.u32 %s143, 4
          %s154 = int_to_ptr.vmem [resolvable:$true] %s153
          %159 = dma.hbm_to_vmem [thread:$0]  %s152, 256, %s154, %s140, 128, 128, 8
        $region20: #{tpu_custom_call.1} parent=15 // pred_fallthru
          _
        // Predicated region
        $region21: #{tpu_custom_call.1} parent=15 // pred_check
          %p160 = pneg %p83
        $region22: #{tpu_custom_call.1} parent=15 // pred_check_branch
          %162 = sbr.rel (%p160) target = $region24
        $region23: #{tpu_custom_call.1} parent=15 // pred_region
          %s163 = sand.u32 %s73, 1
          %s164 = scalar_lea.sflag [#allocation6], %s163
          %s165 = sand.u32 %s73, 1
          %s166 = smul.addr %s165, 16
          %s167 = scalar_lea.vmem [#allocation5], %s166
          %s168 = sadd.s32 %s25, 1
          %s170 = ssub.s32 256, 256
          %171 = vsyncadd %s164, %s170
          %s172 = smul.addr %s168, 2
          %s173 = smul.addr %s24, 8
          %s174 = sadd.s32 %s172, %s173
          %s175 = smul.addr %s174, 128
          %s176 = scalar_lea.hbm %s1, %s175
          %s177 = sshll.u32 %s167, 4
          %s178 = int_to_ptr.vmem [resolvable:$true] %s177
          %183 = dma.hbm_to_vmem [thread:$0]  %s176, 256, %s178, %s164, 128, 128, 8
        $region24: #{tpu_custom_call.1} parent=15 // pred_fallthru
          _
      $region16: #{tpu_custom_call.1} parent=5 // pred_fallthru
        _
      %p184 = scmp.le.s32.totalorder 1, %s17
      %p185 = scmp.lt.s32.totalorder %s17, 7
      %p186 = pnand %p184, %p185
      %p187 = pneg %p186
      // Predicated region
      $region25: #{tpu_custom_call.1} parent=5 // pred_check
        _
      $region26: #{tpu_custom_call.1} parent=5 // pred_check_branch
        %189 = sbr.rel (%p186) target = $region28
      $region27: #{tpu_custom_call.1} parent=5 // pred_region
        %s190 = ssub.s32 %s17, 1
        %s191 = sand.u32 %s46, 1
        %s192 = scalar_lea.sflag [#allocation3], %s191
        %s193 = sand.u32 %s46, 1
        %s194 = smul.addr %s193, 16
        %s195 = scalar_lea.vmem [#allocation2], %s194
        // Predicated region
        $region29: #{tpu_custom_call.1} parent=27 // pred_check
          %p196 = pneg %p59
        $region30: #{tpu_custom_call.1} parent=27 // pred_check_branch
          %198 = sbr.rel (%p196) target = $region32
        $region31: #{tpu_custom_call.1} parent=27 // pred_region
          %199 = dma.done %s192, 256
        $region32: #{tpu_custom_call.1} parent=27 // pred_fallthru
          _
        %s200 = sand.u32 %s76, 1
        %s201 = scalar_lea.sflag [#allocation6], %s200
        %s202 = sand.u32 %s76, 1
        %s203 = smul.addr %s202, 16
        %s204 = scalar_lea.vmem [#allocation5], %s203
        // Predicated region
        $region33: #{tpu_custom_call.1} parent=27 // pred_check
          %p205 = pneg %p89
        $region34: #{tpu_custom_call.1} parent=27 // pred_check_branch
          %207 = sbr.rel (%p205) target = $region36
        $region35: #{tpu_custom_call.1} parent=27 // pred_region
          %208 = dma.done %s201, 256
        $region36: #{tpu_custom_call.1} parent=27 // pred_fallthru
          _
        %s209 = sand.u32 %s46, 1
        %s210 = scalar_lea.sflag [#allocation3], %s209
        %s211 = sand.u32 %s46, 1
        %s212 = smul.addr %s211, 16
        %s213 = scalar_lea.vmem [#allocation2], %s212
        %p214 = pneg %p59
        %p215 = pneg %p56
        %s216 = sand.u32 %s76, 1
        %s217 = scalar_lea.sflag [#allocation6], %s216
        %s218 = sand.u32 %s76, 1
        %s219 = smul.addr %s218, 16
        %s220 = scalar_lea.vmem [#allocation5], %s219
        %p221 = pneg %p89
        %p222 = pneg %p86
        %p223 = pneg %p117
        %p224 = pneg %p114
        %s225 = sand.u32 %s104, 1
        %s226 = scalar_lea.sflag [#allocation4], %s225
        %s227 = sand.u32 %s104, 1
        %s228 = scalar_lea.vmem [#allocation7], %s227
        %s229 = sadd.s32 %s27, 1
        %s230 = sadd.s32 %s27, 1
        %v231 = vld [vmem:[%s195] sm:$0xff]
        %v232 = vld [vmem:[%s195 + $0x8] sm:$0xff]
        %v233 = vld [vmem:[%s204] sm:$0xff]
        %v234 = vld [vmem:[%s204 + $0x8] sm:$0xff]
        %vm237 = vcmask 1046528
        %v238 = vrot.slane %v233, 1
        %v239 = vrot.slane %v234, 1
        %v240 = vsel %vm237, %v238, %v239
        %v243 = vsel %vm237, %v239, inf
        %vm244 = vcmask 1040384
        %v245 = vrot.slane %v233, 7
        %v246 = vrot.slane %v234, 7
        %v247 = vsel %vm244, %v245, %v246
        %v250 = vsel %vm244, inf, %v245
        %v251 = vmin.f32 %v250, %v233
        %v252 = vmin.f32 %v247, %v234
        %v253 = vmin.f32 %v251, %v240
        %v254 = vmin.f32 %v252, %v243
        %255 = vrot.lane.b32.xlu0 %v233, 127
        %v256 = vpop.permute.xlu0 %255
        %257 = vrot.lane.b32.xlu0 %v234, 127
        %v258 = vpop.permute.xlu0 %257
        %vm261 = vcmask 121856
        %v262 = vsel %vm261, %v256, inf
        %v263 = vsel %vm261, %v258, inf
        %264 = vrot.lane.b32.xlu0 %v233, 1
        %v265 = vpop.permute.xlu0 %264
        %266 = vrot.lane.b32.xlu0 %v234, 1
        %v267 = vpop.permute.xlu0 %266
        %vm270 = vcmask 7168
        %v271 = vsel %vm270, inf, %v265
        %v272 = vsel %vm270, inf, %v267
        %v273 = vmin.f32 %v271, %v233
        %v274 = vmin.f32 %v272, %v234
        %v275 = vmin.f32 %v273, %v262
        %v276 = vmin.f32 %v274, %v263
        %v277 = vmin.f32 %v253, %v275
        %v278 = vmin.f32 %v254, %v276
        %v281 = vrot.slane %v277, 1
        %v282 = vrot.slane %v278, 1
        %v283 = vsel %vm237, %v281, %v282
        %v286 = vsel %vm237, %v282, -inf
        %v287 = vrot.slane %v277, 7
        %v288 = vrot.slane %v278, 7
        %v289 = vsel %vm244, %v287, %v288
        %v292 = vsel %vm244, -inf, %v287
        %v293 = vmax.f32 %v292, %v277
        %v294 = vmax.f32 %v289, %v278
        %v295 = vmax.f32 %v293, %v283
        %v296 = vmax.f32 %v294, %v286
        %299 = vrot.lane.b32.xlu0 %v295, 127
        %v300 = vpop.permute.xlu0 %299
        %301 = vrot.lane.b32.xlu0 %v296, 127
        %v302 = vpop.permute.xlu0 %301
        %v305 = vsel %vm261, %v300, -inf
        %v306 = vsel %vm261, %v302, -inf
        %307 = vrot.lane.b32.xlu0 %v295, 1
        %v308 = vpop.permute.xlu0 %307
        %309 = vrot.lane.b32.xlu0 %v296, 1
        %v310 = vpop.permute.xlu0 %309
        %v313 = vsel %vm270, -inf, %v308
        %v314 = vsel %vm270, -inf, %v310
        %v315 = vmax.f32 %v313, %v295
        %v316 = vmax.f32 %v314, %v296
        %v317 = vmax.f32 %v315, %v305
        %v318 = vmax.f32 %v316, %v306
        %v319 = vsub.f32 %v233, %v317
        %v320 = vsub.f32 %v234, %v318
        %v321 = vmax.f32 %v319, 0.0
        %v322 = vmax.f32 %v320, 0.0
        %v323 = vsel %vm237, %v282, inf
        %v324 = vsel %vm244, inf, %v287
        %v325 = vmin.f32 %v324, %v277
        %v326 = vmin.f32 %v289, %v278
        %v327 = vmin.f32 %v325, %v283
        %v328 = vmin.f32 %v326, %v323
        %329 = vrot.lane.b32.xlu0 %v277, 127
        %v330 = vpop.permute.xlu0 %329
        %331 = vrot.lane.b32.xlu0 %v278, 127
        %v332 = vpop.permute.xlu0 %331
        %v335 = vsel %vm261, %v330, inf
        %v336 = vsel %vm261, %v332, inf
        %337 = vrot.lane.b32.xlu0 %v277, 1
        %v338 = vpop.permute.xlu0 %337
        %339 = vrot.lane.b32.xlu0 %v278, 1
        %v340 = vpop.permute.xlu0 %339
        %v343 = vsel %vm270, inf, %v338
        %v344 = vsel %vm270, inf, %v340
        %v345 = vmin.f32 %v343, %v277
        %v346 = vmin.f32 %v344, %v278
        %v347 = vmin.f32 %v345, %v335
        %v348 = vmin.f32 %v346, %v336
        %v349 = vmin.f32 %v327, %v347
        %v350 = vmin.f32 %v328, %v348
        %v353 = vrot.slane %v349, 1
        %v354 = vrot.slane %v350, 1
        %v355 = vsel %vm237, %v353, %v354
        %v358 = vsel %vm237, %v354, -inf
        %v359 = vrot.slane %v349, 7
        %v360 = vrot.slane %v350, 7
        %v361 = vsel %vm244, %v359, %v360
        %v364 = vsel %vm244, -inf, %v359
        %v365 = vmax.f32 %v364, %v349
        %v366 = vmax.f32 %v361, %v350
        %v367 = vmax.f32 %v365, %v355
        %v368 = vmax.f32 %v366, %v358
        %371 = vrot.lane.b32.xlu0 %v367, 127
        %v372 = vpop.permute.xlu0 %371
        %373 = vrot.lane.b32.xlu0 %v368, 127
        %v374 = vpop.permute.xlu0 %373
        %v377 = vsel %vm261, %v372, -inf
        %v378 = vsel %vm261, %v374, -inf
        %379 = vrot.lane.b32.xlu0 %v367, 1
        %v380 = vpop.permute.xlu0 %379
        %381 = vrot.lane.b32.xlu0 %v368, 1
        %v382 = vpop.permute.xlu0 %381
        %v385 = vsel %vm270, -inf, %v380
        %v386 = vsel %vm270, -inf, %v382
        %v387 = vmax.f32 %v385, %v367
        %v388 = vmax.f32 %v386, %v368
        %v389 = vmax.f32 %v387, %v377
        %v390 = vmax.f32 %v388, %v378
        %v391 = vsub.f32 %v277, %v389
        %v392 = vsub.f32 %v278, %v390
        %v393 = vmax.f32 %v391, 0.0
        %v394 = vmax.f32 %v392, 0.0
        %v395 = vmul.f32 %v321, %v393
        %v396 = vmul.f32 %v322, %v394
        %v397 = vsub.f32 %v393, %v395
        %v398 = vsub.f32 %v394, %v396
        %v399 = vmax.f32 %v397, 0.0
        %v400 = vmax.f32 %v398, 0.0
        %v401 = vadd.f32 %v321, %v399
        %v402 = vadd.f32 %v322, %v400
        %v403 = vsel %vm237, %v354, inf
        %v404 = vsel %vm244, inf, %v359
        %v405 = vmin.f32 %v404, %v349
        %v406 = vmin.f32 %v361, %v350
        %v407 = vmin.f32 %v405, %v355
        %v408 = vmin.f32 %v406, %v403
        %409 = vrot.lane.b32.xlu0 %v349, 127
        %v410 = vpop.permute.xlu0 %409
        %411 = vrot.lane.b32.xlu0 %v350, 127
        %v412 = vpop.permute.xlu0 %411
        %v415 = vsel %vm261, %v410, inf
        %v416 = vsel %vm261, %v412, inf
        %417 = vrot.lane.b32.xlu0 %v349, 1
        %v418 = vpop.permute.xlu0 %417
        %419 = vrot.lane.b32.xlu0 %v350, 1
        %v420 = vpop.permute.xlu0 %419
        %v423 = vsel %vm270, inf, %v418
        %v424 = vsel %vm270, inf, %v420
        %v425 = vmin.f32 %v423, %v349
        %v426 = vmin.f32 %v424, %v350
        %v427 = vmin.f32 %v425, %v415
        %v428 = vmin.f32 %v426, %v416
        %v429 = vmin.f32 %v407, %v427
        %v430 = vmin.f32 %v408, %v428
        %v433 = vrot.slane %v429, 1
        %v434 = vrot.slane %v430, 1
        %v435 = vsel %vm237, %v433, %v434
        %v438 = vsel %vm237, %v434, -inf
        %v439 = vrot.slane %v429, 7
        %v440 = vrot.slane %v430, 7
        %v441 = vsel %vm244, %v439, %v440
        %v444 = vsel %vm244, -inf, %v439
        %v445 = vmax.f32 %v444, %v429
        %v446 = vmax.f32 %v441, %v430
        %v447 = vmax.f32 %v445, %v435
        %v448 = vmax.f32 %v446, %v438
        %451 = vrot.lane.b32.xlu0 %v447, 127
        %v452 = vpop.permute.xlu0 %451
        %453 = vrot.lane.b32.xlu0 %v448, 127
        %v454 = vpop.permute.xlu0 %453
        %v457 = vsel %vm261, %v452, -inf
        %v458 = vsel %vm261, %v454, -inf
        %459 = vrot.lane.b32.xlu0 %v447, 1
        %v460 = vpop.permute.xlu0 %459
        %461 = vrot.lane.b32.xlu0 %v448, 1
        %v462 = vpop.permute.xlu0 %461
        %v465 = vsel %vm270, -inf, %v460
        %v466 = vsel %vm270, -inf, %v462
        %v467 = vmax.f32 %v465, %v447
        %v468 = vmax.f32 %v466, %v448
        %v469 = vmax.f32 %v467, %v457
        %v470 = vmax.f32 %v468, %v458
        %v471 = vsub.f32 %v349, %v469
        %v472 = vsub.f32 %v350, %v470
        %v473 = vmax.f32 %v471, 0.0
        %v474 = vmax.f32 %v472, 0.0
        %v475 = vmul.f32 %v401, %v473
        %v476 = vmul.f32 %v402, %v474
        %v477 = vsub.f32 %v473, %v475
        %v478 = vsub.f32 %v474, %v476
        %v479 = vmax.f32 %v477, 0.0
        %v480 = vmax.f32 %v478, 0.0
        %v481 = vadd.f32 %v401, %v479
        %v482 = vadd.f32 %v402, %v480
        %v483 = vsel %vm237, %v434, inf
        %v484 = vsel %vm244, inf, %v439
        %v485 = vmin.f32 %v484, %v429
        %v486 = vmin.f32 %v441, %v430
        %v487 = vmin.f32 %v485, %v435
        %v488 = vmin.f32 %v486, %v483
        %489 = vrot.lane.b32.xlu0 %v429, 127
        %v490 = vpop.permute.xlu0 %489
        %491 = vrot.lane.b32.xlu0 %v430, 127
        %v492 = vpop.permute.xlu0 %491
        %v495 = vsel %vm261, %v490, inf
        %v496 = vsel %vm261, %v492, inf
        %497 = vrot.lane.b32.xlu0 %v429, 1
        %v498 = vpop.permute.xlu0 %497
        %499 = vrot.lane.b32.xlu0 %v430, 1
        %v500 = vpop.permute.xlu0 %499
        %v503 = vsel %vm270, inf, %v498
        %v504 = vsel %vm270, inf, %v500
        %v505 = vmin.f32 %v503, %v429
        %v506 = vmin.f32 %v504, %v430
        %v507 = vmin.f32 %v505, %v495
        %v508 = vmin.f32 %v506, %v496
        %v509 = vmin.f32 %v487, %v507
        %v510 = vmin.f32 %v488, %v508
        %v513 = vrot.slane %v509, 1
        %v514 = vrot.slane %v510, 1
        %v515 = vsel %vm237, %v513, %v514
        %v518 = vsel %vm237, %v514, -inf
        %v519 = vrot.slane %v509, 7
        %v520 = vrot.slane %v510, 7
        %v521 = vsel %vm244, %v519, %v520
        %v524 = vsel %vm244, -inf, %v519
        %v525 = vmax.f32 %v524, %v509
        %v526 = vmax.f32 %v521, %v510
        %v527 = vmax.f32 %v525, %v515
        %v528 = vmax.f32 %v526, %v518
        %531 = vrot.lane.b32.xlu0 %v527, 127
        %v532 = vpop.permute.xlu0 %531
        %533 = vrot.lane.b32.xlu0 %v528, 127
        %v534 = vpop.permute.xlu0 %533
        %v537 = vsel %vm261, %v532, -inf
        %v538 = vsel %vm261, %v534, -inf
        %539 = vrot.lane.b32.xlu0 %v527, 1
        %v540 = vpop.permute.xlu0 %539
        %541 = vrot.lane.b32.xlu0 %v528, 1
        %v542 = vpop.permute.xlu0 %541
        %v545 = vsel %vm270, -inf, %v540
        %v546 = vsel %vm270, -inf, %v542
        %v547 = vmax.f32 %v545, %v527
        %v548 = vmax.f32 %v546, %v528
        %v549 = vmax.f32 %v547, %v537
        %v550 = vmax.f32 %v548, %v538
        %v551 = vsub.f32 %v429, %v549
        %v552 = vsub.f32 %v430, %v550
        %v553 = vmax.f32 %v551, 0.0
        %v554 = vmax.f32 %v552, 0.0
        %v555 = vmul.f32 %v481, %v553
        %v556 = vmul.f32 %v482, %v554
        %v557 = vsub.f32 %v553, %v555
        %v558 = vsub.f32 %v554, %v556
        %v559 = vmax.f32 %v557, 0.0
        %v560 = vmax.f32 %v558, 0.0
        %v561 = vadd.f32 %v481, %v559
        %v562 = vadd.f32 %v482, %v560
        %v563 = vmul.f32 %v561, %v231
        %v564 = vmul.f32 %v562, %v232
        %vm565 = vcmask 130048
        %v566 = vsel %vm565, %v563, 0.0
        %v567 = vsel %vm565, %v564, 0.0
        %v568 = vadd.f32 %v566, %v567
        %569 = vadd.xlane.f32.xlu0 %v568
        %v570 = vpop.xlane.xlu0 %569
        %v571 = vrot.slane %v570, 4
        %v572 = vadd.f32 %v570, %v571
        %v573 = vrot.slane %v572, 2
        %v574 = vadd.f32 %v572, %v573
        %v575 = vrot.slane %v574, 1
        %v576 = vadd.f32 %v574, %v575
        %s577 = vtos %v576
        %v578 = vsel %vm565, %v561, 0.0
        %v579 = vsel %vm565, %v562, 0.0
        %v580 = vadd.f32 %v578, %v579
        %581 = vadd.xlane.f32.xlu0 %v580
        %v582 = vpop.xlane.xlu0 %581
        %v583 = vrot.slane %v582, 4
        %v584 = vadd.f32 %v582, %v583
        %v585 = vrot.slane %v584, 2
        %v586 = vadd.f32 %v584, %v585
        %v587 = vrot.slane %v586, 1
        %v588 = vadd.f32 %v586, %v587
        %s589 = vtos %v588
        %v592 = vrot.slane %v231, 1
        %v593 = vrot.slane %v232, 1
        %v594 = vsel %vm237, %v592, %v593
        %v597 = vsel %vm237, %v593, inf
        %v598 = vrot.slane %v231, 7
        %v599 = vrot.slane %v232, 7
        %v600 = vsel %vm244, %v598, %v599
        %v603 = vsel %vm244, inf, %v598
        %v604 = vmin.f32 %v603, %v231
        %v605 = vmin.f32 %v600, %v232
        %v606 = vmin.f32 %v604, %v594
        %v607 = vmin.f32 %v605, %v597
        %608 = vrot.lane.b32.xlu0 %v231, 127
        %v609 = vpop.permute.xlu0 %608
        %610 = vrot.lane.b32.xlu0 %v232, 127
        %v611 = vpop.permute.xlu0 %610
        %v614 = vsel %vm261, %v609, inf
        %v615 = vsel %vm261, %v611, inf
        %616 = vrot.lane.b32.xlu0 %v231, 1
        %v617 = vpop.permute.xlu0 %616
        %618 = vrot.lane.b32.xlu0 %v232, 1
        %v619 = vpop.permute.xlu0 %618
        %v622 = vsel %vm270, inf, %v617
        %v623 = vsel %vm270, inf, %v619
        %v624 = vmin.f32 %v622, %v231
        %v625 = vmin.f32 %v623, %v232
        %v626 = vmin.f32 %v624, %v614
        %v627 = vmin.f32 %v625, %v615
        %v628 = vmin.f32 %v606, %v626
        %v629 = vmin.f32 %v607, %v627
        %v632 = vrot.slane %v628, 1
        %v633 = vrot.slane %v629, 1
        %v634 = vsel %vm237, %v632, %v633
        %v637 = vsel %vm237, %v633, -inf
        %v638 = vrot.slane %v628, 7
        %v639 = vrot.slane %v629, 7
        %v640 = vsel %vm244, %v638, %v639
        %v643 = vsel %vm244, -inf, %v638
        %v644 = vmax.f32 %v643, %v628
        %v645 = vmax.f32 %v640, %v629
        %v646 = vmax.f32 %v644, %v634
        %v647 = vmax.f32 %v645, %v637
        %650 = vrot.lane.b32.xlu0 %v646, 127
        %v651 = vpop.permute.xlu0 %650
        %652 = vrot.lane.b32.xlu0 %v647, 127
        %v653 = vpop.permute.xlu0 %652
        %v656 = vsel %vm261, %v651, -inf
        %v657 = vsel %vm261, %v653, -inf
        %658 = vrot.lane.b32.xlu0 %v646, 1
        %v659 = vpop.permute.xlu0 %658
        %660 = vrot.lane.b32.xlu0 %v647, 1
        %v661 = vpop.permute.xlu0 %660
        %v664 = vsel %vm270, -inf, %v659
        %v665 = vsel %vm270, -inf, %v661
        %v666 = vmax.f32 %v664, %v646
        %v667 = vmax.f32 %v665, %v647
        %v668 = vmax.f32 %v666, %v656
        %v669 = vmax.f32 %v667, %v657
        %v670 = vsub.f32 %v231, %v668
        %v671 = vsub.f32 %v232, %v669
        %v672 = vmax.f32 %v670, 0.0
        %v673 = vmax.f32 %v671, 0.0
        %v674 = vsel %vm237, %v633, inf
        %v675 = vsel %vm244, inf, %v638
        %v676 = vmin.f32 %v675, %v628
        %v677 = vmin.f32 %v640, %v629
        %v678 = vmin.f32 %v676, %v634
        %v679 = vmin.f32 %v677, %v674
        %680 = vrot.lane.b32.xlu0 %v628, 127
        %v681 = vpop.permute.xlu0 %680
        %682 = vrot.lane.b32.xlu0 %v629, 127
        %v683 = vpop.permute.xlu0 %682
        %v686 = vsel %vm261, %v681, inf
        %v687 = vsel %vm261, %v683, inf
        %688 = vrot.lane.b32.xlu0 %v628, 1
        %v689 = vpop.permute.xlu0 %688
        %690 = vrot.lane.b32.xlu0 %v629, 1
        %v691 = vpop.permute.xlu0 %690
        %v694 = vsel %vm270, inf, %v689
        %v695 = vsel %vm270, inf, %v691
        %v696 = vmin.f32 %v694, %v628
        %v697 = vmin.f32 %v695, %v629
        %v698 = vmin.f32 %v696, %v686
        %v699 = vmin.f32 %v697, %v687
        %v700 = vmin.f32 %v678, %v698
        %v701 = vmin.f32 %v679, %v699
        %v704 = vrot.slane %v700, 1
        %v705 = vrot.slane %v701, 1
        %v706 = vsel %vm237, %v704, %v705
        %v709 = vsel %vm237, %v705, -inf
        %v710 = vrot.slane %v700, 7
        %v711 = vrot.slane %v701, 7
        %v712 = vsel %vm244, %v710, %v711
        %v715 = vsel %vm244, -inf, %v710
        %v716 = vmax.f32 %v715, %v700
        %v717 = vmax.f32 %v712, %v701
        %v718 = vmax.f32 %v716, %v706
        %v719 = vmax.f32 %v717, %v709
        %722 = vrot.lane.b32.xlu0 %v718, 127
        %v723 = vpop.permute.xlu0 %722
        %724 = vrot.lane.b32.xlu0 %v719, 127
        %v725 = vpop.permute.xlu0 %724
        %v728 = vsel %vm261, %v723, -inf
        %v729 = vsel %vm261, %v725, -inf
        %730 = vrot.lane.b32.xlu0 %v718, 1
        %v731 = vpop.permute.xlu0 %730
        %732 = vrot.lane.b32.xlu0 %v719, 1
        %v733 = vpop.permute.xlu0 %732
        %v736 = vsel %vm270, -inf, %v731
        %v737 = vsel %vm270, -inf, %v733
        %v738 = vmax.f32 %v736, %v718
        %v739 = vmax.f32 %v737, %v719
        %v740 = vmax.f32 %v738, %v728
        %v741 = vmax.f32 %v739, %v729
        %v742 = vsub.f32 %v628, %v740
        %v743 = vsub.f32 %v629, %v741
        %v744 = vmax.f32 %v742, 0.0
        %v745 = vmax.f32 %v743, 0.0
        %v746 = vmul.f32 %v672, %v744
        %v747 = vmul.f32 %v673, %v745
        %v748 = vsub.f32 %v744, %v746
        %v749 = vsub.f32 %v745, %v747
        %v750 = vmax.f32 %v748, 0.0
        %v751 = vmax.f32 %v749, 0.0
        %v752 = vadd.f32 %v672, %v750
        %v753 = vadd.f32 %v673, %v751
        %v754 = vsel %vm237, %v705, inf
        %v755 = vsel %vm244, inf, %v710
        %v756 = vmin.f32 %v755, %v700
        %v757 = vmin.f32 %v712, %v701
        %v758 = vmin.f32 %v756, %v706
        %v759 = vmin.f32 %v757, %v754
        %760 = vrot.lane.b32.xlu0 %v700, 127
        %v761 = vpop.permute.xlu0 %760
        %762 = vrot.lane.b32.xlu0 %v701, 127
        %v763 = vpop.permute.xlu0 %762
        %v766 = vsel %vm261, %v761, inf
        %v767 = vsel %vm261, %v763, inf
        %768 = vrot.lane.b32.xlu0 %v700, 1
        %v769 = vpop.permute.xlu0 %768
        %770 = vrot.lane.b32.xlu0 %v701, 1
        %v771 = vpop.permute.xlu0 %770
        %v774 = vsel %vm270, inf, %v769
        %v775 = vsel %vm270, inf, %v771
        %v776 = vmin.f32 %v774, %v700
        %v777 = vmin.f32 %v775, %v701
        %v778 = vmin.f32 %v776, %v766
        %v779 = vmin.f32 %v777, %v767
        %v780 = vmin.f32 %v758, %v778
        %v781 = vmin.f32 %v759, %v779
        %v784 = vrot.slane %v780, 1
        %v785 = vrot.slane %v781, 1
        %v786 = vsel %vm237, %v784, %v785
        %v789 = vsel %vm237, %v785, -inf
        %v790 = vrot.slane %v780, 7
        %v791 = vrot.slane %v781, 7
        %v792 = vsel %vm244, %v790, %v791
        %v795 = vsel %vm244, -inf, %v790
        %v796 = vmax.f32 %v795, %v780
        %v797 = vmax.f32 %v792, %v781
        %v798 = vmax.f32 %v796, %v786
        %v799 = vmax.f32 %v797, %v789
        %802 = vrot.lane.b32.xlu0 %v798, 127
        %v803 = vpop.permute.xlu0 %802
        %804 = vrot.lane.b32.xlu0 %v799, 127
        %v805 = vpop.permute.xlu0 %804
        %v808 = vsel %vm261, %v803, -inf
        %v809 = vsel %vm261, %v805, -inf
        %810 = vrot.lane.b32.xlu0 %v798, 1
        %v811 = vpop.permute.xlu0 %810
        %812 = vrot.lane.b32.xlu0 %v799, 1
        %v813 = vpop.permute.xlu0 %812
        %v816 = vsel %vm270, -inf, %v811
        %v817 = vsel %vm270, -inf, %v813
        %v818 = vmax.f32 %v816, %v798
        %v819 = vmax.f32 %v817, %v799
        %v820 = vmax.f32 %v818, %v808
        %v821 = vmax.f32 %v819, %v809
        %v822 = vsub.f32 %v700, %v820
        %v823 = vsub.f32 %v701, %v821
        %v824 = vmax.f32 %v822, 0.0
        %v825 = vmax.f32 %v823, 0.0
        %v826 = vmul.f32 %v752, %v824
        %v827 = vmul.f32 %v753, %v825
        %v828 = vsub.f32 %v824, %v826
        %v829 = vsub.f32 %v825, %v827
        %v830 = vmax.f32 %v828, 0.0
        %v831 = vmax.f32 %v829, 0.0
        %v832 = vadd.f32 %v752, %v830
        %v833 = vadd.f32 %v753, %v831
        %v834 = vsel %vm237, %v785, inf
        %v835 = vsel %vm244, inf, %v790
        %v836 = vmin.f32 %v835, %v780
        %v837 = vmin.f32 %v792, %v781
        %v838 = vmin.f32 %v836, %v786
        %v839 = vmin.f32 %v837, %v834
        %840 = vrot.lane.b32.xlu0 %v780, 127
        %v841 = vpop.permute.xlu0 %840
        %842 = vrot.lane.b32.xlu0 %v781, 127
        %v843 = vpop.permute.xlu0 %842
        %v846 = vsel %vm261, %v841, inf
        %v847 = vsel %vm261, %v843, inf
        %848 = vrot.lane.b32.xlu0 %v780, 1
        %v849 = vpop.permute.xlu0 %848
        %850 = vrot.lane.b32.xlu0 %v781, 1
        %v851 = vpop.permute.xlu0 %850
        %v854 = vsel %vm270, inf, %v849
        %v855 = vsel %vm270, inf, %v851
        %v856 = vmin.f32 %v854, %v780
        %v857 = vmin.f32 %v855, %v781
        %v858 = vmin.f32 %v856, %v846
        %v859 = vmin.f32 %v857, %v847
        %v860 = vmin.f32 %v838, %v858
        %v861 = vmin.f32 %v839, %v859
        %v864 = vrot.slane %v860, 1
        %v865 = vrot.slane %v861, 1
        %v866 = vsel %vm237, %v864, %v865
        %v869 = vsel %vm237, %v865, -inf
        %v870 = vrot.slane %v860, 7
        %v871 = vrot.slane %v861, 7
        %v872 = vsel %vm244, %v870, %v871
        %v875 = vsel %vm244, -inf, %v870
        %v876 = vmax.f32 %v875, %v860
        %v877 = vmax.f32 %v872, %v861
        %v878 = vmax.f32 %v876, %v866
        %v879 = vmax.f32 %v877, %v869
        %882 = vrot.lane.b32.xlu0 %v878, 127
        %v883 = vpop.permute.xlu0 %882
        %884 = vrot.lane.b32.xlu0 %v879, 127
        %v885 = vpop.permute.xlu0 %884
        %v888 = vsel %vm261, %v883, -inf
        %v889 = vsel %vm261, %v885, -inf
        %890 = vrot.lane.b32.xlu0 %v878, 1
        %v891 = vpop.permute.xlu0 %890
        %892 = vrot.lane.b32.xlu0 %v879, 1
        %v893 = vpop.permute.xlu0 %892
        %v896 = vsel %vm270, -inf, %v891
        %v897 = vsel %vm270, -inf, %v893
        %v898 = vmax.f32 %v896, %v878
        %v899 = vmax.f32 %v897, %v879
        %v900 = vmax.f32 %v898, %v888
        %v901 = vmax.f32 %v899, %v889
        %v902 = vsub.f32 %v780, %v900
        %v903 = vsub.f32 %v781, %v901
        %v904 = vmax.f32 %v902, 0.0
        %v905 = vmax.f32 %v903, 0.0
        %v906 = vmul.f32 %v832, %v904
        %v907 = vmul.f32 %v833, %v905
        %v908 = vsub.f32 %v904, %v906
        %v909 = vsub.f32 %v905, %v907
        %v910 = vmax.f32 %v908, 0.0
        %v911 = vmax.f32 %v909, 0.0
        %v912 = vadd.f32 %v832, %v910
        %v913 = vadd.f32 %v833, %v911
        %v914 = vmul.f32 %v912, %v233
        %v915 = vmul.f32 %v913, %v234
        %v916 = vsel %vm565, %v914, 0.0
        %v917 = vsel %vm565, %v915, 0.0
        %v918 = vadd.f32 %v916, %v917
        %919 = vadd.xlane.f32.xlu0 %v918
        %v920 = vpop.xlane.xlu0 %919
        %v921 = vrot.slane %v920, 4
        %v922 = vadd.f32 %v920, %v921
        %v923 = vrot.slane %v922, 2
        %v924 = vadd.f32 %v922, %v923
        %v925 = vrot.slane %v924, 1
        %v926 = vadd.f32 %v924, %v925
        %s927 = vtos %v926
        %v928 = vsel %vm565, %v912, 0.0
        %v929 = vsel %vm565, %v913, 0.0
        %v930 = vadd.f32 %v928, %v929
        %931 = vadd.xlane.f32.xlu0 %v930
        %v932 = vpop.xlane.xlu0 %931
        %v933 = vrot.slane %v932, 4
        %v934 = vadd.f32 %v932, %v933
        %v935 = vrot.slane %v934, 2
        %v936 = vadd.f32 %v934, %v935
        %v937 = vrot.slane %v936, 1
        %v938 = vadd.f32 %v936, %v937
        %s939 = vtos %v938
        %v940 = vlaneseq
        %v941 = vand.u32 %v940, 127
        %vm942 = vcmp.eq.s32.totalorder %v941, 0
        %v943 = vstv %s577
        %v944 = vsel %vm942, %v943, 0.0
        %vm945 = vcmp.eq.s32.totalorder %v941, 1
        %v946 = vstv %s589
        %v947 = vsel %vm945, %v946, 0.0
        %v948 = vadd.f32 %v944, %v947
        %vm949 = vcmp.eq.s32.totalorder %v941, 2
        %v950 = vstv %s927
        %v951 = vsel %vm949, %v950, 0.0
        %v952 = vadd.f32 %v948, %v951
        %vm953 = vcmp.eq.s32.totalorder %v941, 3
        %v954 = vstv %s939
        %v955 = vsel %vm953, %v954, 0.0
        %v956 = vadd.f32 %v952, %v955
        %957 = vst [vmem:[%s228] sm:$0x1] %v956
        %s958 = sand.u32 %s104, 1
        %s959 = scalar_lea.sflag [#allocation4], %s958
        %s960 = sand.u32 %s104, 1
        %s961 = scalar_lea.vmem [#allocation7], %s960
        // Predicated region
        $region37: #{tpu_custom_call.1} parent=27 // pred_check
          %p962 = pneg %p114
        $region38: #{tpu_custom_call.1} parent=27 // pred_check_branch
          %964 = sbr.rel (%p962) target = $region40
        $region39: #{tpu_custom_call.1} parent=27 // pred_region
          %s966 = ssub.s32 16, 16
          %967 = vsyncadd %s959, %s966
          %s968 = smul.addr %s26, 3
          %s969 = sadd.s32 %s27, %s968
          %s970 = smul.addr %s969, 16
          %s971 = scalar_lea.hbm %s2, %s970
          %s973 = sshll.u32 %s961, 4
          %s974 = int_to_ptr.vmem [resolvable:$true] %s973
          %976 = dma.vmem_to_hbm [thread:$0]  %s974, 16, %s971, %s959
        $region40: #{tpu_custom_call.1} parent=27 // pred_fallthru
          _
      $region28: #{tpu_custom_call.1} parent=5 // pred_fallthru
        _
      %p977 = scmp.le.s32.totalorder 2, %s17
      // Predicated region
      $region41: #{tpu_custom_call.1} parent=5 // pred_check
        %p978 = pneg %p977
      $region42: #{tpu_custom_call.1} parent=5 // pred_check_branch
        %980 = sbr.rel (%p978) target = $region44
      $region43: #{tpu_custom_call.1} parent=5 // pred_region
        %s981 = ssub.s32 %s17, 2
        // Predicated region
        $region45: #{tpu_custom_call.1} parent=43 // pred_check
          %p982 = pneg %p120
        $region46: #{tpu_custom_call.1} parent=43 // pred_check_branch
          %984 = sbr.rel (%p982) target = $region48
        $region47: #{tpu_custom_call.1} parent=43 // pred_region
          %s985 = sand.u32 %s105, 1
          %s986 = scalar_lea.sflag [#allocation4], %s985
          %s987 = sand.u32 %s105, 1
          %s988 = scalar_lea.vmem [#allocation7], %s987
          %989 = dma.done %s986, 16
        $region48: #{tpu_custom_call.1} parent=43 // pred_fallthru
          _
      $region44: #{tpu_custom_call.1} parent=5 // pred_fallthru
        _
    $region6: #{tpu_custom_call.1} parent=1 // loop_footer
      %s21 = sadd.s32 1, %s17
    $region7: #{tpu_custom_call.1} parent=1 // loop_footer_branch
      %16 = sbr.rel target = $region3
    $region8: #{tpu_custom_call.1} parent=1 // loop_exit
      _
    %990 = vsyncpa [#allocation3], 1
    %s991 = scalar_lea.sflag [#allocation3], 1
    %992 = vsyncpa %s991, 1
    %993 = vsyncpa [#allocation6], 1
    %s994 = scalar_lea.sflag [#allocation6], 1
    %995 = vsyncpa %s994, 1
    %996 = vsyncpa [#allocation4], 1
    %s997 = scalar_lea.sflag [#allocation4], 1
    %998 = vsyncpa %s997, 1

</llo_original>
